<compile_context>
chip_gen: v5e
topology: v5e:2x2
jax: 0.10.0
libtpu: 0.0.40
codegen_flags: <defaults>
</compile_context>

<pallas_src>
import functools

import jax
import jax.numpy as jnp
import numpy as np
from jax.experimental import pallas as pl
from jax.experimental.pallas import tpu as pltpu


def _round_up(v, m):
    return ((v + m - 1) // m) * m


# ----------------------------------------------------------------------------------
# Kernel: chunked segment-sum (one-hot matmuls) -> mean -> fc1 -> LayerNorm -> ReLU
#         -> single-step GRU (128-lane padded gates) -> fc2, finalized on last chunk.
# ----------------------------------------------------------------------------------
def _global_model_kernel(
    hs1,                                   # static: true hidden width
    # ---- inputs ----
    seg_n_ref,   # [1, chunk_n] int32  per-node graph id (pad rows carry id B -> zero row)
    x_ref,       # [chunk_n, n_outc]   node features (pad rows are zero)
    seg_e_ref,   # [1, chunk_e] int32  per-edge graph id (= batch[row], pad rows = B)
    e_ref,       # [chunk_e, e_outc]   edge features (pad rows are zero)
    u_ref,       # [B, u_inc]          global features
    inv_ref,     # [B, 2]              [1/node_count, 1/edge_count] per graph
    h_ref,       # [B, HP]             GRU hidden, zero-padded hs1->HP (aliased with hout)
    w1u_ref, w1n_ref, w1e_ref,          # fc1 weight row-blocks, cols zero-padded to HP
    b1_ref, gamma_ref, beta_ref,        # [1, HP] (zero-padded)
    wih_ref, bih_ref, whh_ref, bhh_ref, # GRU weights, per-gate blocks zero-padded to HP
    w2_ref, b2_ref,                     # fc2: [HP, OP], [1, OP] (zero-padded)
    # ---- outputs ----
    out_ref,     # [B, OP]  (lane-dense; wrapper slices to u_outc)
    hout_ref,    # [B, HP]  (lane-dense; wrapper slices to hs1)
    # ---- scratch ----
    accn_ref,    # [B, n_outc] f32 node-feature partial sums
    acce_ref,    # [B, e_outc] f32 edge-feature partial sums
):
    f32 = jnp.float32
    i = pl.program_id(0)
    B, HP = h_ref.shape

    @pl.when(i == 0)
    def _init():
        accn_ref[...] = jnp.zeros_like(accn_ref)
        acce_ref[...] = jnp.zeros_like(acce_ref)

    # ---- chunked segment-sum via one-hot matmuls (padded rows have seg id == B) ----
    cn = seg_n_ref.shape[1]
    oh_n = (seg_n_ref[...] == jax.lax.broadcasted_iota(jnp.int32, (B, cn), 0)).astype(f32)
    accn_ref[...] += jnp.dot(oh_n, x_ref[...], preferred_element_type=f32)

    ce = seg_e_ref.shape[1]
    oh_e = (seg_e_ref[...] == jax.lax.broadcasted_iota(jnp.int32, (B, ce), 0)).astype(f32)
    acce_ref[...] += jnp.dot(oh_e, e_ref[...], preferred_element_type=f32)

    @pl.when(i == pl.num_programs(0) - 1)
    def _finish():
        inv = inv_ref[...]                                # [B, 2]
        n_mean = accn_ref[...] * inv[:, 0:1]
        e_mean = acce_ref[...] * inv[:, 1:2]

        # fc1 of cat([u, n_mean, e_mean]) expressed as 3 matmuls against w1's row blocks.
        z1 = (jnp.dot(u_ref[...], w1u_ref[...], preferred_element_type=f32)
              + jnp.dot(n_mean, w1n_ref[...], preferred_element_type=f32)
              + jnp.dot(e_mean, w1e_ref[...], preferred_element_type=f32)
              + b1_ref[...])

        # LayerNorm over the TRUE hs1 lanes (padded lanes of z1 are exactly zero).
        mean = jnp.sum(z1, axis=-1, keepdims=True) * (1.0 / hs1)
        lane = jax.lax.broadcasted_iota(jnp.int32, z1.shape, 1)
        zc = jnp.where(lane < hs1, z1 - mean, 0.0)
        var = jnp.sum(zc * zc, axis=-1, keepdims=True) * (1.0 / hs1)
        a1 = jnp.maximum(zc * jax.lax.rsqrt(var + 1e-5) * gamma_ref[...] + beta_ref[...], 0.0)

        # Single-step GRU (PyTorch gate order r, z, n); gate blocks at lane offsets 0/HP/2HP.
        h_prev = h_ref[...]
        gi = jnp.dot(a1, wih_ref[...], preferred_element_type=f32) + bih_ref[...]
        gh = jnp.dot(h_prev, whh_ref[...], preferred_element_type=f32) + bhh_ref[...]
        r = jax.nn.sigmoid(gi[:, 0:HP] + gh[:, 0:HP])
        zg = jax.nn.sigmoid(gi[:, HP:2 * HP] + gh[:, HP:2 * HP])
        ng = jnp.tanh(gi[:, 2 * HP:3 * HP] + r * gh[:, 2 * HP:3 * HP])
        h_new = (1.0 - zg) * ng + zg * h_prev             # padded lanes stay exactly 0

        hout_ref[...] = h_new
        out_ref[...] = jnp.dot(h_new, w2_ref[...], preferred_element_type=f32) + b2_ref[...]


# ----------------------------------------------------------------------------------
# One-time parameter preparation (hoisted out of the per-call path).
# Param convention matches the in-script reference: w1 rows ordered [u | node | edge],
# w_ih / w_hh are W^T with shape [hs1, 3*hs1], w2 is fc2^T with shape [hs1, u_outc].
# ----------------------------------------------------------------------------------
def prepare_params(params, *, n_outc, e_outc, u_inc):
    f32 = jnp.float32
    hs1 = int(params["b1"].shape[0])
    u_outc = int(params["w2"].shape[1])
    HP = _round_up(hs1, 128)
    OP = _round_up(u_outc, 128)

    w1 = params["w1"].astype(f32)
    pad_c = lambda w: jnp.pad(w, ((0, 0), (0, HP - hs1)))
    w1_u = pad_c(w1[:u_inc])
    w1_n = pad_c(w1[u_inc:u_inc + n_outc])
    w1_e = pad_c(w1[u_inc + n_outc:])

    vec = lambda v, P: jnp.pad(v.astype(f32), (0, P - v.shape[0])).reshape(1, P)

    def gate_w(w):                                   # [hs1, 3*hs1] -> [HP, 3*HP], zero pads
        blk = [jnp.pad(w[:, g * hs1:(g + 1) * hs1].astype(f32),
                       ((0, HP - hs1), (0, HP - hs1))) for g in range(3)]
        return jnp.concatenate(blk, axis=1)

    def gate_b(b):                                   # [3*hs1] -> [1, 3*HP], zero pads
        return jnp.concatenate(
            [jnp.pad(b[g * hs1:(g + 1) * hs1].astype(f32), (0, HP - hs1)) for g in range(3)]
        ).reshape(1, 3 * HP)

    w2 = jnp.pad(params["w2"].astype(f32), ((0, HP - hs1), (0, OP - u_outc)))

    return dict(
        hs1=hs1, HP=HP, u_outc=u_outc, OP=OP,
        n_outc=n_outc, e_outc=e_outc, u_inc=u_inc,
        w1_u=w1_u, w1_n=w1_n, w1_e=w1_e,
        b1=vec(params["b1"], HP), gamma=vec(params["gamma"], HP), beta=vec(params["beta"], HP),
        w_ih=gate_w(params["w_ih"]), b_ih=gate_b(params["b_ih"]),
        w_hh=gate_w(params["w_hh"]), b_hh=gate_b(params["b_hh"]),
        w2=w2, b2=vec(params["b2"], OP),
    )


# ----------------------------------------------------------------------------------
# Per-call wrapper: only segment ids, tiny inverse counts, and padding glue remain here.
# ----------------------------------------------------------------------------------
def recurrent_global_model(x, edge_index, edge_attr, h, u, batch, prep, *, chunk_rows=2048):
    f32 = jnp.float32
    B, hs1 = h.shape
    N, n_outc = x.shape
    E, e_outc = edge_attr.shape
    u_inc = u.shape[1]
    assert (hs1, n_outc, e_outc, u_inc) == (prep["hs1"], prep["n_outc"],
                                            prep["e_outc"], prep["u_inc"])
    HP, OP, u_outc = prep["HP"], prep["OP"], prep["u_outc"]

    seg_n = batch.astype(jnp.int32)
    seg_e = jnp.take(batch, edge_index[0]).astype(jnp.int32)        # batch[row] (glue gather)
    cnt_n = jax.ops.segment_sum(jnp.ones((N,), f32), seg_n, num_segments=B)
    cnt_e = jax.ops.segment_sum(jnp.ones((E,), f32), seg_e, num_segments=B)
    inv = jnp.stack([1.0 / jnp.maximum(cnt_n, 1.0),
                     1.0 / jnp.maximum(cnt_e, 1.0)], axis=1)         # [B, 2]

    # Row-chunked reduction grid so VMEM stays bounded at production N/E (v7x: 64 MiB/TC).
    nc = max(pl.cdiv(N, chunk_rows), pl.cdiv(E, chunk_rows))
    if nc == 1:
        chunk_n, chunk_e = N, E                         # block == full array (no padding)
    else:
        chunk_n = _round_up(pl.cdiv(N, nc), 128)        # keep lane/sublane tiling legal
        chunk_e = _round_up(pl.cdiv(E, nc), 128)
    Np, Ep = chunk_n * nc, chunk_e * nc

    xf = x.astype(f32)
    ef = edge_attr.astype(f32)
    if Np > N:
        xf = jnp.pad(xf, ((0, Np - N), (0, 0)))
        seg_n = jnp.pad(seg_n, (0, Np - N), constant_values=B)       # id B -> zero one-hot row
    if Ep > E:
        ef = jnp.pad(ef, ((0, Ep - E), (0, 0)))
        seg_e = jnp.pad(seg_e, (0, Ep - E), constant_values=B)
    seg_n = seg_n.reshape(1, Np)
    seg_e = seg_e.reshape(1, Ep)

    # Fresh padded-h buffer (this, not the caller's h, is donated to the aliased output).
    h_p = jnp.pad(h.astype(f32), ((0, 0), (0, HP - hs1)))

    grid_spec = pltpu.PrefetchScalarGridSpec(
        num_scalar_prefetch=0,
        grid=(nc,),
        in_specs=[
            pl.BlockSpec((1, chunk_n), lambda i: (0, i)),            # seg_n
            pl.BlockSpec((chunk_n, n_outc), lambda i: (i, 0)),       # x
            pl.BlockSpec((1, chunk_e), lambda i: (0, i)),            # seg_e
            pl.BlockSpec((chunk_e, e_outc), lambda i: (i, 0)),       # edge_attr
            pl.BlockSpec((B, u_inc), lambda i: (0, 0)),              # u
            pl.BlockSpec((B, 2), lambda i: (0, 0)),                  # inverse counts
            pl.BlockSpec((B, HP), lambda i: (0, 0)),                 # h (aliased)
            pl.BlockSpec((u_inc, HP), lambda i: (0, 0)),             # w1_u
            pl.BlockSpec((n_outc, HP), lambda i: (0, 0)),            # w1_n
            pl.BlockSpec((e_outc, HP), lambda i: (0, 0)),            # w1_e
            pl.BlockSpec((1, HP), lambda i: (0, 0)),                 # b1
            pl.BlockSpec((1, HP), lambda i: (0, 0)),                 # gamma
            pl.BlockSpec((1, HP), lambda i: (0, 0)),                 # beta
            pl.BlockSpec((HP, 3 * HP), lambda i: (0, 0)),            # w_ih
            pl.BlockSpec((1, 3 * HP), lambda i: (0, 0)),             # b_ih
            pl.BlockSpec((HP, 3 * HP), lambda i: (0, 0)),            # w_hh
            pl.BlockSpec((1, 3 * HP), lambda i: (0, 0)),             # b_hh
            pl.BlockSpec((HP, OP), lambda i: (0, 0)),                # w2
            pl.BlockSpec((1, OP), lambda i: (0, 0)),                 # b2
        ],
        out_specs=(
            pl.BlockSpec((B, OP), lambda i: (0, 0)),
            pl.BlockSpec((B, HP), lambda i: (0, 0)),
        ),
        scratch_shapes=[
            pltpu.VMEM((B, n_outc), jnp.float32),
            pltpu.VMEM((B, e_outc), jnp.float32),
        ],
    )

    out_p, h_out = pl.pallas_call(
        functools.partial(_global_model_kernel, hs1),
        out_shape=(jax.ShapeDtypeStruct((B, OP), f32),
                   jax.ShapeDtypeStruct((B, HP), f32)),
        grid_spec=grid_spec,
        input_output_aliases={6: 1},     # padded h buffer reused for hout
        # NOTE: raise vmem_limit_bytes here when using larger chunk_rows on 128-MiB parts
        # (v5e/v6e); keep <= ~48 MiB on v7x (64 MiB / TensorCore).
        compiler_params=pltpu.CompilerParams(dimension_semantics=("arbitrary",)),
    )(seg_n, xf, seg_e, ef, u.astype(f32), inv, h_p,
      prep["w1_u"], prep["w1_n"], prep["w1_e"],
      prep["b1"], prep["gamma"], prep["beta"],
      prep["w_ih"], prep["b_ih"], prep["w_hh"], prep["b_hh"],
      prep["w2"], prep["b2"])

    return out_p[:, :u_outc], h_out[:, :hs1]


# ----------------------------------------------------------------------------------
# Pure-JAX reference (mirrors the PyTorch forward) for a correctness check.
# ----------------------------------------------------------------------------------
def _reference(x, edge_index, edge_attr, h, u, batch, params, B):
    def seg_mean(v, seg, nseg):
        s = jax.ops.segment_sum(v, seg, num_segments=nseg)
        c = jax.ops.segment_sum(jnp.ones((v.shape[0],), jnp.float32), seg, num_segments=nseg)
        return s / jnp.maximum(c, 1.0)[:, None]

    row = edge_index[0]
    edge_batch = batch[row]
    e_agg = seg_mean(edge_attr, edge_batch, B)
    n_agg = seg_mean(x, batch, B)
    cat = jnp.concatenate([u, n_agg, e_agg], axis=1)
    z1 = cat @ params["w1"] + params["b1"]
    mean = z1.mean(-1, keepdims=True)
    var = ((z1 - mean) ** 2).mean(-1, keepdims=True)
    a1 = jax.nn.relu(((z1 - mean) / jnp.sqrt(var + 1e-5)) * params["gamma"] + params["beta"])
    hs1 = h.shape[1]
    gi = a1 @ params["w_ih"] + params["b_ih"]
    gh = h @ params["w_hh"] + params["b_hh"]
    r = jax.nn.sigmoid(gi[:, :hs1] + gh[:, :hs1])
    z = jax.nn.sigmoid(gi[:, hs1:2 * hs1] + gh[:, hs1:2 * hs1])
    n = jnp.tanh(gi[:, 2 * hs1:] + r * gh[:, 2 * hs1:])
    h_new = (1.0 - z) * n + z * h
    out = h_new @ params["w2"] + params["b2"]
    return out, h_new


# ----------------------------------------------------------------------------------
if __name__ == "__main__":
    B, N, E = 2, 16, 24
    n_outc, e_outc, u_inc = 4, 6, 8
    hs1, u_outc = 32, 5
    inc = u_inc + n_outc + e_outc

    key = jax.random.PRNGKey(0)
    ks = jax.random.split(key, 16)

    x = jax.random.normal(ks[0], (N, n_outc), jnp.float32)
    edge_attr = jax.random.normal(ks[1], (E, e_outc), jnp.float32)
    u = jax.random.normal(ks[2], (B, u_inc), jnp.float32)
    h = jax.random.normal(ks[3], (B, hs1), jnp.float32)
    batch = jnp.concatenate([jnp.zeros((N // 2,), jnp.int32),
                             jnp.ones((N - N // 2,), jnp.int32)])
    row = jax.random.randint(ks[4], (E,), 0, N, jnp.int32)
    col = jax.random.randint(ks[5], (E,), 0, N, jnp.int32)
    edge_index = jnp.stack([row, col], axis=0)

    params = {
        "w1":    0.1 * jax.random.normal(ks[6],  (inc, hs1), jnp.float32),
        "b1":    0.1 * jax.random.normal(ks[7],  (hs1,), jnp.float32),
        "gamma": 1.0 + 0.1 * jax.random.normal(ks[8], (hs1,), jnp.float32),
        "beta":  0.1 * jax.random.normal(ks[9],  (hs1,), jnp.float32),
        "w_ih":  0.1 * jax.random.normal(ks[10], (hs1, 3 * hs1), jnp.float32),  # W_ih^T
        "b_ih":  0.1 * jax.random.normal(ks[11], (3 * hs1,), jnp.float32),
        "w_hh":  0.1 * jax.random.normal(ks[12], (hs1, 3 * hs1), jnp.float32),  # W_hh^T
        "b_hh":  0.1 * jax.random.normal(ks[13], (3 * hs1,), jnp.float32),
        "w2":    0.1 * jax.random.normal(ks[14], (hs1, u_outc), jnp.float32),   # fc2^T
        "b2":    0.1 * jax.random.normal(ks[15], (u_outc,), jnp.float32),
    }

    # One-time parameter preparation (hoisted out of the per-step path).
    prep = prepare_params(params, n_outc=n_outc, e_outc=e_outc, u_inc=u_inc)

    ref_out, ref_h = _reference(x, edge_index, edge_attr, h, u, batch, params, B)

    out, h_new = recurrent_global_model(x, edge_index, edge_attr, h, u, batch, prep)
    out, h_new = jax.block_until_ready((out, h_new))

    np.testing.assert_allclose(np.asarray(out), np.asarray(ref_out), rtol=1e-4, atol=1e-5)
    np.testing.assert_allclose(np.asarray(h_new), np.asarray(ref_h), rtol=1e-4, atol=1e-5)

    print("KERNEL_OK")
</pallas_src>

<mosaic_0001>
module attributes {stable_mosaic.version = 11 : i64} {
  func.func @_global_model_kernel(%arg0: i32, %arg1: memref<1x16xi32, #tpu.memory_space<vmem>>, %arg2: memref<16x4xf32, #tpu.memory_space<vmem>>, %arg3: memref<1x24xi32, #tpu.memory_space<vmem>>, %arg4: memref<24x6xf32, #tpu.memory_space<vmem>>, %arg5: memref<2x8xf32, #tpu.memory_space<vmem>>, %arg6: memref<2x2xf32, #tpu.memory_space<vmem>>, %arg7: memref<2x128xf32, #tpu.memory_space<vmem>>, %arg8: memref<8x128xf32, #tpu.memory_space<vmem>>, %arg9: memref<4x128xf32, #tpu.memory_space<vmem>>, %arg10: memref<6x128xf32, #tpu.memory_space<vmem>>, %arg11: memref<1x128xf32, #tpu.memory_space<vmem>>, %arg12: memref<1x128xf32, #tpu.memory_space<vmem>>, %arg13: memref<1x128xf32, #tpu.memory_space<vmem>>, %arg14: memref<128x384xf32, #tpu.memory_space<vmem>>, %arg15: memref<1x384xf32, #tpu.memory_space<vmem>>, %arg16: memref<128x384xf32, #tpu.memory_space<vmem>>, %arg17: memref<1x384xf32, #tpu.memory_space<vmem>>, %arg18: memref<128x128xf32, #tpu.memory_space<vmem>>, %arg19: memref<1x128xf32, #tpu.memory_space<vmem>>, %arg20: memref<2x128xf32, #tpu.memory_space<vmem>>, %arg21: memref<2x128xf32, #tpu.memory_space<vmem>>, %arg22: memref<2x4xf32, #tpu.memory_space<vmem>>, %arg23: memref<2x6xf32, #tpu.memory_space<vmem>>) attributes {dimension_semantics = [#tpu.dimension_semantics<arbitrary>], iteration_bounds = array<i64: 1>, scalar_prefetch = 0 : i64, scratch_operands = 2 : i64, tpu.core_type = #tpu.core_type<tc>, window_params = [{transform_indices = @transform_0, window_bounds = array<i64: 1, 16>}, {transform_indices = @transform_1, window_bounds = array<i64: 16, 4>}, {transform_indices = @transform_2, window_bounds = array<i64: 1, 24>}, {transform_indices = @transform_3, window_bounds = array<i64: 24, 6>}, {pipeline_mode = #tpu.pipeline_mode<synchronous>, transform_indices = @transform_4, window_bounds = array<i64: 2, 8>}, {pipeline_mode = #tpu.pipeline_mode<synchronous>, transform_indices = @transform_5, window_bounds = array<i64: 2, 2>}, {pipeline_mode = #tpu.pipeline_mode<synchronous>, transform_indices = @transform_6, window_bounds = array<i64: 2, 128>}, {pipeline_mode = #tpu.pipeline_mode<synchronous>, transform_indices = @transform_7, window_bounds = array<i64: 8, 128>}, {pipeline_mode = #tpu.pipeline_mode<synchronous>, transform_indices = @transform_8, window_bounds = array<i64: 4, 128>}, {pipeline_mode = #tpu.pipeline_mode<synchronous>, transform_indices = @transform_9, window_bounds = array<i64: 6, 128>}, {pipeline_mode = #tpu.pipeline_mode<synchronous>, transform_indices = @transform_10, window_bounds = array<i64: 1, 128>}, {pipeline_mode = #tpu.pipeline_mode<synchronous>, transform_indices = @transform_11, window_bounds = array<i64: 1, 128>}, {pipeline_mode = #tpu.pipeline_mode<synchronous>, transform_indices = @transform_12, window_bounds = array<i64: 1, 128>}, {pipeline_mode = #tpu.pipeline_mode<synchronous>, transform_indices = @transform_13, window_bounds = array<i64: 128, 384>}, {pipeline_mode = #tpu.pipeline_mode<synchronous>, transform_indices = @transform_14, window_bounds = array<i64: 1, 384>}, {pipeline_mode = #tpu.pipeline_mode<synchronous>, transform_indices = @transform_15, window_bounds = array<i64: 128, 384>}, {pipeline_mode = #tpu.pipeline_mode<synchronous>, transform_indices = @transform_16, window_bounds = array<i64: 1, 384>}, {pipeline_mode = #tpu.pipeline_mode<synchronous>, transform_indices = @transform_17, window_bounds = array<i64: 128, 128>}, {pipeline_mode = #tpu.pipeline_mode<synchronous>, transform_indices = @transform_18, window_bounds = array<i64: 1, 128>}, {pipeline_mode = #tpu.pipeline_mode<synchronous>, transform_indices = @transform_19, window_bounds = array<i64: 2, 128>}, {pipeline_mode = #tpu.pipeline_mode<synchronous>, transform_indices = @transform_20, window_bounds = array<i64: 2, 128>}]} {
    %c0_i32 = arith.constant 0 : i32
    %0 = arith.cmpi eq, %arg0, %c0_i32 : i32
    %1 = arith.extui %0 : i1 to i32
    %c0_i32_0 = arith.constant 0 : i32
    %2 = arith.cmpi ne, %1, %c0_i32_0 : i32
    scf.if %2 {
      %cst_19 = arith.constant 0.000000e+00 : f32
      %28 = vector.broadcast %cst_19 : f32 to vector<2x4xf32>
      %c0_20 = arith.constant 0 : index
      %c0_21 = arith.constant 0 : index
      %29 = vector.load %arg22[%c0_20, %c0_21] : memref<2x4xf32, #tpu.memory_space<vmem>>, vector<2x4xf32>
      tpu.vector_store %arg22[%c0_20, %c0_21], %28 {strides = array<i32>} : memref<2x4xf32, #tpu.memory_space<vmem>>, vector<2x4xf32>,
      %cst_22 = arith.constant 0.000000e+00 : f32
      %30 = vector.broadcast %cst_22 : f32 to vector<2x6xf32>
      %c0_23 = arith.constant 0 : index
      %c0_24 = arith.constant 0 : index
      %31 = vector.load %arg23[%c0_23, %c0_24] : memref<2x6xf32, #tpu.memory_space<vmem>>, vector<2x6xf32>
      tpu.vector_store %arg23[%c0_23, %c0_24], %30 {strides = array<i32>} : memref<2x6xf32, #tpu.memory_space<vmem>>, vector<2x6xf32>,
    } else {
    }
    %c0 = arith.constant 0 : index
    %c0_1 = arith.constant 0 : index
    %3 = vector.load %arg1[%c0, %c0_1] : memref<1x16xi32, #tpu.memory_space<vmem>>, vector<1x16xi32>
    %4 = tpu.iota {dimensions = array<i32: 0>} : vector<2x16xi32>
    %5 = vector.broadcast %3 : vector<1x16xi32> to vector<2x16xi32>
    %6 = arith.cmpi eq, %5, %4 : vector<2x16xi32>
    %7 = arith.extui %6 : vector<2x16xi1> to vector<2x16xi32>
    %8 = arith.sitofp %7 : vector<2x16xi32> to vector<2x16xf32>
    %c0_2 = arith.constant 0 : index
    %c0_3 = arith.constant 0 : index
    %9 = vector.load %arg22[%c0_2, %c0_3] : memref<2x4xf32, #tpu.memory_space<vmem>>, vector<2x4xf32>
    %c0_4 = arith.constant 0 : index
    %c0_5 = arith.constant 0 : index
    %10 = vector.load %arg2[%c0_4, %c0_5] : memref<16x4xf32, #tpu.memory_space<vmem>>, vector<16x4xf32>
    %cst = arith.constant dense<0.000000e+00> : vector<2x4xf32>
    %11 = tpu.matmul %8, %10, %cst {dimension_numbers = #tpu.dot_dimension_numbers<[1], [0], [0], [1], [0, 0, 1, 1], [], []>} : vector<2x16xf32>, vector<16x4xf32>, vector<2x4xf32> -> vector<2x4xf32>
    %12 = arith.addf %9, %11 : vector<2x4xf32>
    %c0_6 = arith.constant 0 : index
    %c0_7 = arith.constant 0 : index
    %13 = vector.load %arg22[%c0_6, %c0_7] : memref<2x4xf32, #tpu.memory_space<vmem>>, vector<2x4xf32>
    tpu.vector_store %arg22[%c0_6, %c0_7], %12 {strides = array<i32>} : memref<2x4xf32, #tpu.memory_space<vmem>>, vector<2x4xf32>,
    %c0_8 = arith.constant 0 : index
    %c0_9 = arith.constant 0 : index
    %14 = vector.load %arg3[%c0_8, %c0_9] : memref<1x24xi32, #tpu.memory_space<vmem>>, vector<1x24xi32>
    %15 = tpu.iota {dimensions = array<i32: 0>} : vector<2x24xi32>
    %16 = vector.broadcast %14 : vector<1x24xi32> to vector<2x24xi32>
    %17 = arith.cmpi eq, %16, %15 : vector<2x24xi32>
    %18 = arith.extui %17 : vector<2x24xi1> to vector<2x24xi32>
    %19 = arith.sitofp %18 : vector<2x24xi32> to vector<2x24xf32>
    %c0_10 = arith.constant 0 : index
    %c0_11 = arith.constant 0 : index
    %20 = vector.load %arg23[%c0_10, %c0_11] : memref<2x6xf32, #tpu.memory_space<vmem>>, vector<2x6xf32>
    %c0_12 = arith.constant 0 : index
    %c0_13 = arith.constant 0 : index
    %21 = vector.load %arg4[%c0_12, %c0_13] : memref<24x6xf32, #tpu.memory_space<vmem>>, vector<24x6xf32>
    %cst_14 = arith.constant dense<0.000000e+00> : vector<2x6xf32>
    %22 = tpu.matmul %19, %21, %cst_14 {dimension_numbers = #tpu.dot_dimension_numbers<[1], [0], [0], [1], [0, 0, 1, 1], [], []>} : vector<2x24xf32>, vector<24x6xf32>, vector<2x6xf32> -> vector<2x6xf32>
    %23 = arith.addf %20, %22 : vector<2x6xf32>
    %c0_15 = arith.constant 0 : index
    %c0_16 = arith.constant 0 : index
    %24 = vector.load %arg23[%c0_15, %c0_16] : memref<2x6xf32, #tpu.memory_space<vmem>>, vector<2x6xf32>
    tpu.vector_store %arg23[%c0_15, %c0_16], %23 {strides = array<i32>} : memref<2x6xf32, #tpu.memory_space<vmem>>, vector<2x6xf32>,
    %c0_i32_17 = arith.constant 0 : i32
    %25 = arith.cmpi eq, %arg0, %c0_i32_17 : i32
    %26 = arith.extui %25 : i1 to i32
    %c0_i32_18 = arith.constant 0 : i32
    %27 = arith.cmpi ne, %26, %c0_i32_18 : i32
    scf.if %27 {
      %c0_19 = arith.constant 0 : index
      %c0_20 = arith.constant 0 : index
      %28 = vector.load %arg6[%c0_19, %c0_20] : memref<2x2xf32, #tpu.memory_space<vmem>>, vector<2x2xf32>
      %c0_21 = arith.constant 0 : index
      %c0_22 = arith.constant 0 : index
      %29 = vector.load %arg22[%c0_21, %c0_22] : memref<2x4xf32, #tpu.memory_space<vmem>>, vector<2x4xf32>
      %30 = vector.extract_strided_slice %28 {offsets = [0, 0], sizes = [2, 1], strides = [1, 1]} : vector<2x2xf32> to vector<2x1xf32>
      %31 = vector.broadcast %30 : vector<2x1xf32> to vector<2x4xf32>
      %32 = arith.mulf %29, %31 : vector<2x4xf32>
      %c0_23 = arith.constant 0 : index
      %c0_24 = arith.constant 0 : index
      %33 = vector.load %arg23[%c0_23, %c0_24] : memref<2x6xf32, #tpu.memory_space<vmem>>, vector<2x6xf32>
      %34 = vector.extract_strided_slice %28 {offsets = [0, 1], sizes = [2, 1], strides = [1, 1]} : vector<2x2xf32> to vector<2x1xf32>
      %35 = vector.broadcast %34 : vector<2x1xf32> to vector<2x6xf32>
      %36 = arith.mulf %33, %35 : vector<2x6xf32>
      %c0_25 = arith.constant 0 : index
      %c0_26 = arith.constant 0 : index
      %37 = vector.load %arg5[%c0_25, %c0_26] : memref<2x8xf32, #tpu.memory_space<vmem>>, vector<2x8xf32>
      %c0_27 = arith.constant 0 : index
      %c0_28 = arith.constant 0 : index
      %38 = vector.load %arg8[%c0_27, %c0_28] : memref<8x128xf32, #tpu.memory_space<vmem>>, vector<8x128xf32>
      %cst_29 = arith.constant dense<0.000000e+00> : vector<2x128xf32>
      %39 = tpu.matmul %37, %38, %cst_29 {dimension_numbers = #tpu.dot_dimension_numbers<[1], [0], [0], [1], [0, 0, 1, 1], [], []>} : vector<2x8xf32>, vector<8x128xf32>, vector<2x128xf32> -> vector<2x128xf32>
      %c0_30 = arith.constant 0 : index
      %c0_31 = arith.constant 0 : index
      %40 = vector.load %arg9[%c0_30, %c0_31] : memref<4x128xf32, #tpu.memory_space<vmem>>, vector<4x128xf32>
      %cst_32 = arith.constant dense<0.000000e+00> : vector<2x128xf32>
      %41 = tpu.matmul %32, %40, %cst_32 {dimension_numbers = #tpu.dot_dimension_numbers<[1], [0], [0], [1], [0, 0, 1, 1], [], []>} : vector<2x4xf32>, vector<4x128xf32>, vector<2x128xf32> -> vector<2x128xf32>
      %42 = arith.addf %39, %41 : vector<2x128xf32>
      %c0_33 = arith.constant 0 : index
      %c0_34 = arith.constant 0 : index
      %43 = vector.load %arg10[%c0_33, %c0_34] : memref<6x128xf32, #tpu.memory_space<vmem>>, vector<6x128xf32>
      %cst_35 = arith.constant dense<0.000000e+00> : vector<2x128xf32>
      %44 = tpu.matmul %36, %43, %cst_35 {dimension_numbers = #tpu.dot_dimension_numbers<[1], [0], [0], [1], [0, 0, 1, 1], [], []>} : vector<2x6xf32>, vector<6x128xf32>, vector<2x128xf32> -> vector<2x128xf32>
      %45 = arith.addf %42, %44 : vector<2x128xf32>
      %c0_36 = arith.constant 0 : index
      %c0_37 = arith.constant 0 : index
      %46 = vector.load %arg11[%c0_36, %c0_37] : memref<1x128xf32, #tpu.memory_space<vmem>>, vector<1x128xf32>
      %47 = vector.broadcast %46 : vector<1x128xf32> to vector<2x128xf32>
      %48 = arith.addf %45, %47 : vector<2x128xf32>
      %cst_38 = arith.constant dense<0.000000e+00> : vector<2xf32>
      %49 = vector.multi_reduction <add>, %48, %cst_38 [1] : vector<2x128xf32> to vector<2xf32>
      %50 = vector.shape_cast %49 : vector<2xf32> to vector<2x1xf32>
      %cst_39 = arith.constant 3.125000e-02 : f32
      %51 = vector.broadcast %cst_39 : f32 to vector<2x1xf32>
      %52 = arith.mulf %50, %51 : vector<2x1xf32>
      %53 = tpu.iota {dimensions = array<i32: 1>} : vector<2x128xi32>
      %c32_i32 = arith.constant 32 : i32
      %54 = vector.broadcast %c32_i32 : i32 to vector<2x128xi32>
      %55 = arith.cmpi slt, %53, %54 : vector<2x128xi32>
      %56 = vector.broadcast %52 : vector<2x1xf32> to vector<2x128xf32>
      %57 = arith.subf %48, %56 : vector<2x128xf32>
      %cst_40 = arith.constant 0.000000e+00 : f32
      %58 = vector.broadcast %cst_40 : f32 to vector<2x128xf32>
      %59 = arith.select %55, %57, %58 : vector<2x128xi1>, vector<2x128xf32>
      %60 = arith.mulf %59, %59 : vector<2x128xf32>
      %cst_41 = arith.constant dense<0.000000e+00> : vector<2xf32>
      %61 = vector.multi_reduction <add>, %60, %cst_41 [1] : vector<2x128xf32> to vector<2xf32>
      %62 = vector.shape_cast %61 : vector<2xf32> to vector<2x1xf32>
      %cst_42 = arith.constant 3.125000e-02 : f32
      %63 = vector.broadcast %cst_42 : f32 to vector<2x1xf32>
      %64 = arith.mulf %62, %63 : vector<2x1xf32>
      %cst_43 = arith.constant 9.99999974E-6 : f32
      %65 = vector.broadcast %cst_43 : f32 to vector<2x1xf32>
      %66 = arith.addf %64, %65 : vector<2x1xf32>
      %67 = math.rsqrt %66 : vector<2x1xf32>
      %68 = vector.broadcast %67 : vector<2x1xf32> to vector<2x128xf32>
      %69 = arith.mulf %59, %68 : vector<2x128xf32>
      %c0_44 = arith.constant 0 : index
      %c0_45 = arith.constant 0 : index
      %70 = vector.load %arg12[%c0_44, %c0_45] : memref<1x128xf32, #tpu.memory_space<vmem>>, vector<1x128xf32>
      %71 = vector.broadcast %70 : vector<1x128xf32> to vector<2x128xf32>
      %72 = arith.mulf %69, %71 : vector<2x128xf32>
      %c0_46 = arith.constant 0 : index
      %c0_47 = arith.constant 0 : index
      %73 = vector.load %arg13[%c0_46, %c0_47] : memref<1x128xf32, #tpu.memory_space<vmem>>, vector<1x128xf32>
      %74 = vector.broadcast %73 : vector<1x128xf32> to vector<2x128xf32>
      %75 = arith.addf %72, %74 : vector<2x128xf32>
      %cst_48 = arith.constant 0.000000e+00 : f32
      %76 = vector.broadcast %cst_48 : f32 to vector<2x128xf32>
      %77 = arith.maximumf %75, %76 : vector<2x128xf32>
      %c0_49 = arith.constant 0 : index
      %c0_50 = arith.constant 0 : index
      %78 = vector.load %arg7[%c0_49, %c0_50] : memref<2x128xf32, #tpu.memory_space<vmem>>, vector<2x128xf32>
      %c0_51 = arith.constant 0 : index
      %c0_52 = arith.constant 0 : index
      %79 = vector.load %arg14[%c0_51, %c0_52] : memref<128x384xf32, #tpu.memory_space<vmem>>, vector<128x384xf32>
      %cst_53 = arith.constant dense<0.000000e+00> : vector<2x384xf32>
      %80 = tpu.matmul %77, %79, %cst_53 {dimension_numbers = #tpu.dot_dimension_numbers<[1], [0], [0], [1], [0, 0, 1, 1], [], []>} : vector<2x128xf32>, vector<128x384xf32>, vector<2x384xf32> -> vector<2x384xf32>
      %c0_54 = arith.constant 0 : index
      %c0_55 = arith.constant 0 : index
      %81 = vector.load %arg15[%c0_54, %c0_55] : memref<1x384xf32, #tpu.memory_space<vmem>>, vector<1x384xf32>
      %82 = vector.broadcast %81 : vector<1x384xf32> to vector<2x384xf32>
      %83 = arith.addf %80, %82 : vector<2x384xf32>
      %c0_56 = arith.constant 0 : index
      %c0_57 = arith.constant 0 : index
      %84 = vector.load %arg16[%c0_56, %c0_57] : memref<128x384xf32, #tpu.memory_space<vmem>>, vector<128x384xf32>
      %cst_58 = arith.constant dense<0.000000e+00> : vector<2x384xf32>
      %85 = tpu.matmul %78, %84, %cst_58 {dimension_numbers = #tpu.dot_dimension_numbers<[1], [0], [0], [1], [0, 0, 1, 1], [], []>} : vector<2x128xf32>, vector<128x384xf32>, vector<2x384xf32> -> vector<2x384xf32>
      %c0_59 = arith.constant 0 : index
      %c0_60 = arith.constant 0 : index
      %86 = vector.load %arg17[%c0_59, %c0_60] : memref<1x384xf32, #tpu.memory_space<vmem>>, vector<1x384xf32>
      %87 = vector.broadcast %86 : vector<1x384xf32> to vector<2x384xf32>
      %88 = arith.addf %85, %87 : vector<2x384xf32>
      %89 = vector.extract_strided_slice %83 {offsets = [0, 0], sizes = [2, 128], strides = [1, 1]} : vector<2x384xf32> to vector<2x128xf32>
      %90 = vector.extract_strided_slice %88 {offsets = [0, 0], sizes = [2, 128], strides = [1, 1]} : vector<2x384xf32> to vector<2x128xf32>
      %91 = arith.addf %89, %90 : vector<2x128xf32>
      %92 = arith.negf %91 : vector<2x128xf32>
      %93 = math.exp %92 : vector<2x128xf32>
      %cst_61 = arith.constant 1.000000e+00 : f32
      %94 = vector.broadcast %cst_61 : f32 to vector<2x128xf32>
      %95 = arith.addf %94, %93 : vector<2x128xf32>
      %96 = arith.divf %94, %95 : vector<2x128xf32>
      %97 = vector.extract_strided_slice %83 {offsets = [0, 128], sizes = [2, 128], strides = [1, 1]} : vector<2x384xf32> to vector<2x128xf32>
      %98 = vector.extract_strided_slice %88 {offsets = [0, 128], sizes = [2, 128], strides = [1, 1]} : vector<2x384xf32> to vector<2x128xf32>
      %99 = arith.addf %97, %98 : vector<2x128xf32>
      %100 = arith.negf %99 : vector<2x128xf32>
      %101 = math.exp %100 : vector<2x128xf32>
      %cst_62 = arith.constant 1.000000e+00 : f32
      %102 = vector.broadcast %cst_62 : f32 to vector<2x128xf32>
      %103 = arith.addf %102, %101 : vector<2x128xf32>
      %104 = arith.divf %102, %103 : vector<2x128xf32>
      %105 = vector.extract_strided_slice %83 {offsets = [0, 256], sizes = [2, 128], strides = [1, 1]} : vector<2x384xf32> to vector<2x128xf32>
      %106 = vector.extract_strided_slice %88 {offsets = [0, 256], sizes = [2, 128], strides = [1, 1]} : vector<2x384xf32> to vector<2x128xf32>
      %107 = arith.mulf %96, %106 : vector<2x128xf32>
      %108 = arith.addf %105, %107 : vector<2x128xf32>
      %109 = math.tanh %108 : vector<2x128xf32>
      %cst_63 = arith.constant 1.000000e+00 : f32
      %110 = vector.broadcast %cst_63 : f32 to vector<2x128xf32>
      %111 = arith.subf %110, %104 : vector<2x128xf32>
      %112 = arith.mulf %111, %109 : vector<2x128xf32>
      %113 = arith.mulf %104, %78 : vector<2x128xf32>
      %114 = arith.addf %112, %113 : vector<2x128xf32>
      %c0_64 = arith.constant 0 : index
      %c0_65 = arith.constant 0 : index
      %115 = vector.load %arg21[%c0_64, %c0_65] : memref<2x128xf32, #tpu.memory_space<vmem>>, vector<2x128xf32>
      tpu.vector_store %arg21[%c0_64, %c0_65], %114 {strides = array<i32>} : memref<2x128xf32, #tpu.memory_space<vmem>>, vector<2x128xf32>,
      %c0_66 = arith.constant 0 : index
      %c0_67 = arith.constant 0 : index
      %116 = vector.load %arg18[%c0_66, %c0_67] : memref<128x128xf32, #tpu.memory_space<vmem>>, vector<128x128xf32>
      %cst_68 = arith.constant dense<0.000000e+00> : vector<2x128xf32>
      %117 = tpu.matmul %114, %116, %cst_68 {dimension_numbers = #tpu.dot_dimension_numbers<[1], [0], [0], [1], [0, 0, 1, 1], [], []>} : vector<2x128xf32>, vector<128x128xf32>, vector<2x128xf32> -> vector<2x128xf32>
      %c0_69 = arith.constant 0 : index
      %c0_70 = arith.constant 0 : index
      %118 = vector.load %arg19[%c0_69, %c0_70] : memref<1x128xf32, #tpu.memory_space<vmem>>, vector<1x128xf32>
      %119 = vector.broadcast %118 : vector<1x128xf32> to vector<2x128xf32>
      %120 = arith.addf %117, %119 : vector<2x128xf32>
      %c0_71 = arith.constant 0 : index
      %c0_72 = arith.constant 0 : index
      %121 = vector.load %arg20[%c0_71, %c0_72] : memref<2x128xf32, #tpu.memory_space<vmem>>, vector<2x128xf32>
      tpu.vector_store %arg20[%c0_71, %c0_72], %120 {strides = array<i32>} : memref<2x128xf32, #tpu.memory_space<vmem>>, vector<2x128xf32>,
    } else {
    }
    return
  }
  func.func @transform_0(%arg0: i32) -> (i32, i32) {
    %c0_i32 = arith.constant 0 : i32
    %c0_i32_0 = arith.constant 0 : i32
    return %c0_i32, %arg0 : i32, i32
  }
  func.func @transform_1(%arg0: i32) -> (i32, i32) {
    %c0_i32 = arith.constant 0 : i32
    %c0_i32_0 = arith.constant 0 : i32
    return %arg0, %c0_i32 : i32, i32
  }
  func.func @transform_2(%arg0: i32) -> (i32, i32) {
    %c0_i32 = arith.constant 0 : i32
    %c0_i32_0 = arith.constant 0 : i32
    return %c0_i32, %arg0 : i32, i32
  }
  func.func @transform_3(%arg0: i32) -> (i32, i32) {
    %c0_i32 = arith.constant 0 : i32
    %c0_i32_0 = arith.constant 0 : i32
    return %arg0, %c0_i32 : i32, i32
  }
  func.func @transform_4(%arg0: i32) -> (i32, i32) {
    %c0_i32 = arith.constant 0 : i32
    %c0_i32_0 = arith.constant 0 : i32
    %c0_i32_1 = arith.constant 0 : i32
    return %c0_i32, %c0_i32_0 : i32, i32
  }
  func.func @transform_5(%arg0: i32) -> (i32, i32) {
    %c0_i32 = arith.constant 0 : i32
    %c0_i32_0 = arith.constant 0 : i32
    %c0_i32_1 = arith.constant 0 : i32
    return %c0_i32, %c0_i32_0 : i32, i32
  }
  func.func @transform_6(%arg0: i32) -> (i32, i32) {
    %c0_i32 = arith.constant 0 : i32
    %c0_i32_0 = arith.constant 0 : i32
    %c0_i32_1 = arith.constant 0 : i32
    return %c0_i32, %c0_i32_0 : i32, i32
  }
  func.func @transform_7(%arg0: i32) -> (i32, i32) {
    %c0_i32 = arith.constant 0 : i32
    %c0_i32_0 = arith.constant 0 : i32
    %c0_i32_1 = arith.constant 0 : i32
    return %c0_i32, %c0_i32_0 : i32, i32
  }
  func.func @transform_8(%arg0: i32) -> (i32, i32) {
    %c0_i32 = arith.constant 0 : i32
    %c0_i32_0 = arith.constant 0 : i32
    %c0_i32_1 = arith.constant 0 : i32
    return %c0_i32, %c0_i32_0 : i32, i32
  }
  func.func @transform_9(%arg0: i32) -> (i32, i32) {
    %c0_i32 = arith.constant 0 : i32
    %c0_i32_0 = arith.constant 0 : i32
    %c0_i32_1 = arith.constant 0 : i32
    return %c0_i32, %c0_i32_0 : i32, i32
  }
  func.func @transform_10(%arg0: i32) -> (i32, i32) {
    %c0_i32 = arith.constant 0 : i32
    %c0_i32_0 = arith.constant 0 : i32
    %c0_i32_1 = arith.constant 0 : i32
    return %c0_i32, %c0_i32_0 : i32, i32
  }
  func.func @transform_11(%arg0: i32) -> (i32, i32) {
    %c0_i32 = arith.constant 0 : i32
    %c0_i32_0 = arith.constant 0 : i32
    %c0_i32_1 = arith.constant 0 : i32
    return %c0_i32, %c0_i32_0 : i32, i32
  }
  func.func @transform_12(%arg0: i32) -> (i32, i32) {
    %c0_i32 = arith.constant 0 : i32
    %c0_i32_0 = arith.constant 0 : i32
    %c0_i32_1 = arith.constant 0 : i32
    return %c0_i32, %c0_i32_0 : i32, i32
  }
  func.func @transform_13(%arg0: i32) -> (i32, i32) {
    %c0_i32 = arith.constant 0 : i32
    %c0_i32_0 = arith.constant 0 : i32
    %c0_i32_1 = arith.constant 0 : i32
    return %c0_i32, %c0_i32_0 : i32, i32
  }
  func.func @transform_14(%arg0: i32) -> (i32, i32) {
    %c0_i32 = arith.constant 0 : i32
    %c0_i32_0 = arith.constant 0 : i32
    %c0_i32_1 = arith.constant 0 : i32
    return %c0_i32, %c0_i32_0 : i32, i32
  }
  func.func @transform_15(%arg0: i32) -> (i32, i32) {
    %c0_i32 = arith.constant 0 : i32
    %c0_i32_0 = arith.constant 0 : i32
    %c0_i32_1 = arith.constant 0 : i32
    return %c0_i32, %c0_i32_0 : i32, i32
  }
  func.func @transform_16(%arg0: i32) -> (i32, i32) {
    %c0_i32 = arith.constant 0 : i32
    %c0_i32_0 = arith.constant 0 : i32
    %c0_i32_1 = arith.constant 0 : i32
    return %c0_i32, %c0_i32_0 : i32, i32
  }
  func.func @transform_17(%arg0: i32) -> (i32, i32) {
    %c0_i32 = arith.constant 0 : i32
    %c0_i32_0 = arith.constant 0 : i32
    %c0_i32_1 = arith.constant 0 : i32
    return %c0_i32, %c0_i32_0 : i32, i32
  }
  func.func @transform_18(%arg0: i32) -> (i32, i32) {
    %c0_i32 = arith.constant 0 : i32
    %c0_i32_0 = arith.constant 0 : i32
    %c0_i32_1 = arith.constant 0 : i32
    return %c0_i32, %c0_i32_0 : i32, i32
  }
  func.func @transform_19(%arg0: i32) -> (i32, i32) {
    %c0_i32 = arith.constant 0 : i32
    %c0_i32_0 = arith.constant 0 : i32
    %c0_i32_1 = arith.constant 0 : i32
    return %c0_i32, %c0_i32_0 : i32, i32
  }
  func.func @transform_20(%arg0: i32) -> (i32, i32) {
    %c0_i32 = arith.constant 0 : i32
    %c0_i32_0 = arith.constant 0 : i32
    %c0_i32_1 = arith.constant 0 : i32
    return %c0_i32, %c0_i32_0 : i32, i32
  }
}

</mosaic_0001>

<llo_original>
// kernel: tpu_custom_call.1
$region0: #{tpu_custom_call.1}
  #allocation0 [shape = 'u32[]', space=smem, size = 0x4, offset = 0x4, fixed_abs, tag = 'smem constant byte address 0x4 - core index']
  #allocation1 [shape = 'u32[72,128]{1,0:T(1,128)}', space=vmem, size = 0x9000, scoped, tag = 'internal scratch']
  #allocation2 [shape = 'f32[2,4]{1,0:T(2,128)}', space=vmem, size = 0x400, scoped, tag = 'scratch operand']
  #allocation3 [shape = 'f32[2,6]{1,0:T(2,128)}', space=vmem, size = 0x400, scoped, tag = 'scratch operand']
  %s0 = inlined_call_operand.vmem [shape: s32[1,16], index: 0, kind: input, shape index: {}]
  %s1 = inlined_call_operand.vmem [shape: f32[16,4], index: 1, kind: input, shape index: {}]
  %s2 = inlined_call_operand.vmem [shape: s32[1,24], index: 2, kind: input, shape index: {}]
  %s3 = inlined_call_operand.vmem [shape: f32[24,6], index: 3, kind: input, shape index: {}]
  %s4 = inlined_call_operand.vmem [shape: f32[2,8], index: 4, kind: input, shape index: {}]
  %s5 = inlined_call_operand.vmem [shape: f32[2,2], index: 5, kind: input, shape index: {}]
  %s6 = inlined_call_operand.hbm [shape: f32[2,128], index: 6, kind: input, shape index: {}, may-alias: {6,20}]
  %s7 = inlined_call_operand.vmem [shape: f32[8,128], index: 7, kind: input, shape index: {}]
  %s8 = inlined_call_operand.vmem [shape: f32[4,128], index: 8, kind: input, shape index: {}]
  %s9 = inlined_call_operand.vmem [shape: f32[6,128], index: 9, kind: input, shape index: {}]
  %s10 = inlined_call_operand.vmem [shape: f32[1,128], index: 10, kind: input, shape index: {}]
  %s11 = inlined_call_operand.vmem [shape: f32[1,128], index: 11, kind: input, shape index: {}]
  %s12 = inlined_call_operand.vmem [shape: f32[1,128], index: 12, kind: input, shape index: {}]
  %s13 = inlined_call_operand.hbm [shape: f32[128,384], index: 13, kind: input, shape index: {}]
  %s14 = inlined_call_operand.vmem [shape: f32[1,384], index: 14, kind: input, shape index: {}]
  %s15 = inlined_call_operand.hbm [shape: f32[128,384], index: 15, kind: input, shape index: {}]
  %s16 = inlined_call_operand.vmem [shape: f32[1,384], index: 16, kind: input, shape index: {}]
  %s17 = inlined_call_operand.hbm [shape: f32[128,128], index: 17, kind: input, shape index: {}]
  %s18 = inlined_call_operand.vmem [shape: f32[1,128], index: 18, kind: input, shape index: {}]
  %s19 = inlined_call_operand.hbm [shape: f32[2,128], index: 19, kind: output, shape index: {0}]
  %s20 = inlined_call_operand.hbm [shape: f32[2,128], index: 20, kind: output, shape index: {1}, may-alias: {6,20}]
  %21 = xla_tuple %s19, %s20
  %s22 = sld [smem:[#allocation0]]
  $region118: #{tpu_custom_call.1} parent=0
    _
  %s24 = ssub.s32 1, %s22
  %s25 = scalar_select 0, %s24, %s22
  $region1: #{tpu_custom_call.1} parent=0
    #allocation4 [shape = 'u8[1024]{0}', space=vmem, size = 0x400, scoped, tag = 'input window, operand 6, single buffered']
    #allocation5 [shape = 's32[1]{0}', space=sflag, size = 0x4, scoped, tag = 'scoped memory for tpu_custom_call.1']
    #allocation6 [shape = 's32[1]{0}', space=sflag, size = 0x4, scoped, tag = 'scoped memory for tpu_custom_call.1']
    #allocation7 [shape = 'u8[196608]{0}', space=vmem, size = 0x30000, scoped, tag = 'input window, operand 13, single buffered']
    #allocation8 [shape = 's32[1]{0}', space=sflag, size = 0x4, scoped, tag = 'scoped memory for tpu_custom_call.1']
    #allocation9 [shape = 'u8[196608]{0}', space=vmem, size = 0x30000, scoped, tag = 'input window, operand 15, single buffered']
    #allocation10 [shape = 'u8[65536]{0}', space=vmem, size = 0x10000, scoped, tag = 'input window, operand 17, single buffered']
    #allocation11 [shape = 's32[1]{0}', space=sflag, size = 0x4, scoped, tag = 'scoped memory for tpu_custom_call.1']
    #allocation12 [shape = 'u8[1024]{0}', space=vmem, size = 0x400, scoped, tag = 'output window, operand 0, single buffered']
    #allocation13 [shape = 'u8[1024]{0}', space=vmem, size = 0x400, scoped, tag = 'output window, operand 1, single buffered']
    #allocation14 [shape = 's32[1]{0}', space=sflag, size = 0x4, scoped, tag = 'scoped memory for tpu_custom_call.1']
    %26 = vsyncpa [#allocation5], 0
    %27 = vsyncpa [#allocation8], 0
    %28 = vsyncpa [#allocation11], 0
    %29 = vsyncpa [#allocation6], 0
    %30 = vsyncpa [#allocation14], 0
    // Predicated region
    $region2: #{tpu_custom_call.1} parent=1 // pred_check
      _
    $region3: #{tpu_custom_call.1} parent=1 // pred_check_branch
      %32 = sbr.rel (0) target = $region5
    $region4: #{tpu_custom_call.1} parent=1 // pred_region
      _
    $region5: #{tpu_custom_call.1} parent=1 // pred_fallthru
      _
    // Predicated region
    $region6: #{tpu_custom_call.1} parent=1 // pred_check
      _
    $region7: #{tpu_custom_call.1} parent=1 // pred_check_branch
      %34 = sbr.rel (0) target = $region9
    $region8: #{tpu_custom_call.1} parent=1 // pred_region
      _
    $region9: #{tpu_custom_call.1} parent=1 // pred_fallthru
      _
    // Predicated region
    $region10: #{tpu_custom_call.1} parent=1 // pred_check
      _
    $region11: #{tpu_custom_call.1} parent=1 // pred_check_branch
      %36 = sbr.rel (0) target = $region13
    $region12: #{tpu_custom_call.1} parent=1 // pred_region
      _
    $region13: #{tpu_custom_call.1} parent=1 // pred_fallthru
      _
    // Predicated region
    $region14: #{tpu_custom_call.1} parent=1 // pred_check
      _
    $region15: #{tpu_custom_call.1} parent=1 // pred_check_branch
      %38 = sbr.rel (0) target = $region17
    $region16: #{tpu_custom_call.1} parent=1 // pred_region
      _
    $region17: #{tpu_custom_call.1} parent=1 // pred_fallthru
      _
    // Predicated region
    $region18: #{tpu_custom_call.1} parent=1 // pred_check
      _
    $region19: #{tpu_custom_call.1} parent=1 // pred_check_branch
      %40 = sbr.rel (0) target = $region21
    $region20: #{tpu_custom_call.1} parent=1 // pred_region
      _
    $region21: #{tpu_custom_call.1} parent=1 // pred_fallthru
      _
    // Predicated region
    $region22: #{tpu_custom_call.1} parent=1 // pred_check
      _
    $region23: #{tpu_custom_call.1} parent=1 // pred_check_branch
      %42 = sbr.rel (0) target = $region25
    $region24: #{tpu_custom_call.1} parent=1 // pred_region
      _
    $region25: #{tpu_custom_call.1} parent=1 // pred_fallthru
      _
    // Predicated region
    $region26: #{tpu_custom_call.1} parent=1 // pred_check
      _
    $region27: #{tpu_custom_call.1} parent=1 // pred_check_branch
      %44 = sbr.rel (0) target = $region29
    $region28: #{tpu_custom_call.1} parent=1 // pred_region
      %46 = vsyncadd [#allocation5], 0
      %s48 = sshll.u32 %s6, 4
      %s49 = int_to_ptr.hbm [resolvable:$true] %s48
      %s50 = sshll.u32 [#allocation4], 4
      %s51 = int_to_ptr.vmem [resolvable:$true] %s50
      %53 = dma.hbm_to_vmem [thread:$0]  %s49, 32, %s51, [#allocation5]
    $region29: #{tpu_custom_call.1} parent=1 // pred_fallthru
      _
    // Predicated region
    $region30: #{tpu_custom_call.1} parent=1 // pred_check
      _
    $region31: #{tpu_custom_call.1} parent=1 // pred_check_branch
      %55 = sbr.rel (0) target = $region33
    $region32: #{tpu_custom_call.1} parent=1 // pred_region
      _
    $region33: #{tpu_custom_call.1} parent=1 // pred_fallthru
      _
    // Predicated region
    $region34: #{tpu_custom_call.1} parent=1 // pred_check
      _
    $region35: #{tpu_custom_call.1} parent=1 // pred_check_branch
      %57 = sbr.rel (0) target = $region37
    $region36: #{tpu_custom_call.1} parent=1 // pred_region
      _
    $region37: #{tpu_custom_call.1} parent=1 // pred_fallthru
      _
    // Predicated region
    $region38: #{tpu_custom_call.1} parent=1 // pred_check
      _
    $region39: #{tpu_custom_call.1} parent=1 // pred_check_branch
      %59 = sbr.rel (0) target = $region41
    $region40: #{tpu_custom_call.1} parent=1 // pred_region
      _
    $region41: #{tpu_custom_call.1} parent=1 // pred_fallthru
      _
    // Predicated region
    $region42: #{tpu_custom_call.1} parent=1 // pred_check
      _
    $region43: #{tpu_custom_call.1} parent=1 // pred_check_branch
      %61 = sbr.rel (0) target = $region45
    $region44: #{tpu_custom_call.1} parent=1 // pred_region
      _
    $region45: #{tpu_custom_call.1} parent=1 // pred_fallthru
      _
    // Predicated region
    $region46: #{tpu_custom_call.1} parent=1 // pred_check
      _
    $region47: #{tpu_custom_call.1} parent=1 // pred_check_branch
      %63 = sbr.rel (0) target = $region49
    $region48: #{tpu_custom_call.1} parent=1 // pred_region
      _
    $region49: #{tpu_custom_call.1} parent=1 // pred_fallthru
      _
    // Predicated region
    $region50: #{tpu_custom_call.1} parent=1 // pred_check
      _
    $region51: #{tpu_custom_call.1} parent=1 // pred_check_branch
      %65 = sbr.rel (0) target = $region53
    $region52: #{tpu_custom_call.1} parent=1 // pred_region
      _
    $region53: #{tpu_custom_call.1} parent=1 // pred_fallthru
      _
    // Predicated region
    $region54: #{tpu_custom_call.1} parent=1 // pred_check
      _
    $region55: #{tpu_custom_call.1} parent=1 // pred_check_branch
      %67 = sbr.rel (0) target = $region57
    $region56: #{tpu_custom_call.1} parent=1 // pred_region
      %69 = vsyncadd [#allocation8], 0
      %s70 = sshll.u32 %s13, 4
      %s71 = int_to_ptr.hbm [resolvable:$true] %s70
      %s72 = sshll.u32 [#allocation7], 4
      %s73 = int_to_ptr.vmem [resolvable:$true] %s72
      %78 = dma.hbm_to_vmem [thread:$0]  %s71, 6144, %s73, [#allocation8], 384, 384, 24
    $region57: #{tpu_custom_call.1} parent=1 // pred_fallthru
      _
    // Predicated region
    $region58: #{tpu_custom_call.1} parent=1 // pred_check
      _
    $region59: #{tpu_custom_call.1} parent=1 // pred_check_branch
      %80 = sbr.rel (0) target = $region61
    $region60: #{tpu_custom_call.1} parent=1 // pred_region
      _
    $region61: #{tpu_custom_call.1} parent=1 // pred_fallthru
      _
    // Predicated region
    $region62: #{tpu_custom_call.1} parent=1 // pred_check
      _
    $region63: #{tpu_custom_call.1} parent=1 // pred_check_branch
      %82 = sbr.rel (0) target = $region65
    $region64: #{tpu_custom_call.1} parent=1 // pred_region
      %84 = vsyncadd [#allocation8], 0
      %s85 = sshll.u32 %s15, 4
      %s86 = int_to_ptr.hbm [resolvable:$true] %s85
      %s87 = sshll.u32 [#allocation9], 4
      %s88 = int_to_ptr.vmem [resolvable:$true] %s87
      %93 = dma.hbm_to_vmem [thread:$0]  %s86, 6144, %s88, [#allocation8], 384, 384, 24
    $region65: #{tpu_custom_call.1} parent=1 // pred_fallthru
      _
    // Predicated region
    $region66: #{tpu_custom_call.1} parent=1 // pred_check
      _
    $region67: #{tpu_custom_call.1} parent=1 // pred_check_branch
      %95 = sbr.rel (0) target = $region69
    $region68: #{tpu_custom_call.1} parent=1 // pred_region
      _
    $region69: #{tpu_custom_call.1} parent=1 // pred_fallthru
      _
    // Predicated region
    $region70: #{tpu_custom_call.1} parent=1 // pred_check
      _
    $region71: #{tpu_custom_call.1} parent=1 // pred_check_branch
      %97 = sbr.rel (0) target = $region73
    $region72: #{tpu_custom_call.1} parent=1 // pred_region
      %99 = vsyncadd [#allocation11], 0
      %s100 = sshll.u32 %s17, 4
      %s101 = int_to_ptr.hbm [resolvable:$true] %s100
      %s102 = sshll.u32 [#allocation10], 4
      %s103 = int_to_ptr.vmem [resolvable:$true] %s102
      %108 = dma.hbm_to_vmem [thread:$0]  %s101, 2048, %s103, [#allocation11], 128, 128, 8
    $region73: #{tpu_custom_call.1} parent=1 // pred_fallthru
      _
    // Predicated region
    $region74: #{tpu_custom_call.1} parent=1 // pred_check
      _
    $region75: #{tpu_custom_call.1} parent=1 // pred_check_branch
      %110 = sbr.rel (0) target = $region77
    $region76: #{tpu_custom_call.1} parent=1 // pred_region
      _
    $region77: #{tpu_custom_call.1} parent=1 // pred_fallthru
      _
    // Predicated region
    $region78: #{tpu_custom_call.1} parent=1 // pred_check
      _
    $region79: #{tpu_custom_call.1} parent=1 // pred_check_branch
      %112 = sbr.rel (0) target = $region81
    $region80: #{tpu_custom_call.1} parent=1 // pred_region
      %114 = dma.done [#allocation5], 32
    $region81: #{tpu_custom_call.1} parent=1 // pred_fallthru
      _
    // Predicated region
    $region82: #{tpu_custom_call.1} parent=1 // pred_check
      _
    $region83: #{tpu_custom_call.1} parent=1 // pred_check_branch
      %116 = sbr.rel (0) target = $region85
    $region84: #{tpu_custom_call.1} parent=1 // pred_region
      %118 = dma.done [#allocation8], 6144
    $region85: #{tpu_custom_call.1} parent=1 // pred_fallthru
      _
    // Predicated region
    $region86: #{tpu_custom_call.1} parent=1 // pred_check
      _
    $region87: #{tpu_custom_call.1} parent=1 // pred_check_branch
      %120 = sbr.rel (0) target = $region89
    $region88: #{tpu_custom_call.1} parent=1 // pred_region
      %122 = dma.done [#allocation8], 6144
    $region89: #{tpu_custom_call.1} parent=1 // pred_fallthru
      _
    // Predicated region
    $region90: #{tpu_custom_call.1} parent=1 // pred_check
      _
    $region91: #{tpu_custom_call.1} parent=1 // pred_check_branch
      %124 = sbr.rel (0) target = $region93
    $region92: #{tpu_custom_call.1} parent=1 // pred_region
      %126 = dma.done [#allocation11], 2048
    $region93: #{tpu_custom_call.1} parent=1 // pred_fallthru
      _
    %p127 = scmp.eq.s32.totalorder 0, 0
    // Predicated region
    $region94: #{tpu_custom_call.1} parent=1 // pred_check
      %p128 = pneg %p127
    $region95: #{tpu_custom_call.1} parent=1 // pred_check_branch
      %130 = sbr.rel (%p128) target = $region97
    $region96: #{tpu_custom_call.1} parent=1 // pred_region
      %vm131 = vcmask 25600
      %132 = vst.msk [vmem:[#allocation2] sm:$0x3] %vm131, 0.0
      %vm133 = vcmask 41984
      %134 = vst.msk [vmem:[#allocation3] sm:$0x3] %vm133, 0.0
    $region97: #{tpu_custom_call.1} parent=1 // pred_fallthru
      _
    %v135 = vld [vmem:[%s0] sm:$0x1]
    %v136 = vlaneseq
    %v137 = vshrl.u32 %v136, 7
    %v138 = vperm.slane %v135, 0
    %vm139 = vcmp.eq.s32.totalorder %v138, %v137
    %v140 = vsel %vm139, 1, 0
    %v141 = vcvt.s32.f32 %v140
    %v142 = vld [vmem:[#allocation2] sm:$0x3]
    %v143 = vld [vmem:[%s1] sm:$0xff]
    %v144 = vld [vmem:[%s1 + $0x8] sm:$0xff]
    %vm145 = vcmask 130048
    %v147 = vsel %vm145, %v141, 0
    %149 = vmatpush.msra.mxu0 0.0
    %150 = vmatpush.msra.mxu0 0.0
    %151 = vmatpush.msra.mxu0 0.0
    %152 = vmatpush.msra.mxu0 0.0
    %153 = vmatpush.msra.mxu0 0.0
    %154 = vmatpush.msra.mxu0 0.0
    %155 = vmatpush.msra.mxu0 0.0
    %156 = vmatpush.msra.mxu0 0.0
    %157 = vmatpush.msra.mxu0 0.0
    %158 = vmatpush.msra.mxu0 0.0
    %159 = vmatpush.msra.mxu0 0.0
    %160 = vmatpush.msra.mxu0 0.0
    %161 = vmatpush.msra.mxu0 0.0
    %162 = vmatpush.msra.mxu0 0.0
    %163 = vmatpush.msra.mxu0 %v144
    %164 = vmatpush.msra.mxu0 %v143
    %165 = vmatmul.f32.gmra.mxu0 %v147
    %v166 = vpop.f32.mrf.mxu0
    %v167 = vadd.f32 0.0, %v166
    %168 = vdwg.mxu0
    %v169 = vadd.f32 %v142, %v167
    %vm170 = vcmask 25600
    %171 = vst.msk [vmem:[#allocation2] sm:$0x3] %vm170, %v169
    %v172 = vld [vmem:[%s2] sm:$0x1]
    %v173 = vperm.slane %v172, 0
    %vm174 = vcmp.eq.s32.totalorder %v173, %v137
    %v175 = vsel %vm174, 1, 0
    %v176 = vcvt.s32.f32 %v175
    %v177 = vld [vmem:[#allocation3] sm:$0x3]
    %v178 = vld [vmem:[%s3] sm:$0xff]
    %v179 = vld [vmem:[%s3 + $0x8] sm:$0xff]
    %v180 = vld [vmem:[%s3 + $0x10] sm:$0xff]
    %vm181 = vcmask 195584
    %v183 = vsel %vm181, %v176, 0
    %185 = vmatpush.msra.mxu0 0.0
    %186 = vmatpush.msra.mxu0 0.0
    %187 = vmatpush.msra.mxu0 0.0
    %188 = vmatpush.msra.mxu0 0.0
    %189 = vmatpush.msra.mxu0 0.0
    %190 = vmatpush.msra.mxu0 0.0
    %191 = vmatpush.msra.mxu0 0.0
    %192 = vmatpush.msra.mxu0 0.0
    %193 = vmatpush.msra.mxu0 0.0
    %194 = vmatpush.msra.mxu0 0.0
    %195 = vmatpush.msra.mxu0 0.0
    %196 = vmatpush.msra.mxu0 0.0
    %197 = vmatpush.msra.mxu0 0.0
    %198 = vmatpush.msra.mxu0 %v180
    %199 = vmatpush.msra.mxu0 %v179
    %200 = vmatpush.msra.mxu0 %v178
    %201 = vmatmul.f32.gmra.mxu0 %v183
    %v202 = vpop.f32.mrf.mxu0
    %v203 = vadd.f32 0.0, %v202
    %204 = vdwg.mxu0
    %v205 = vadd.f32 %v177, %v203
    %vm206 = vcmask 41984
    %207 = vst.msk [vmem:[#allocation3] sm:$0x3] %vm206, %v205
    // Predicated region
    $region98: #{tpu_custom_call.1} parent=1 // pred_check
      %p208 = pneg %p127
    $region99: #{tpu_custom_call.1} parent=1 // pred_check_branch
      %210 = sbr.rel (%p208) target = $region101
    $region100: #{tpu_custom_call.1} parent=1 // pred_region
      %v211 = vld [vmem:[%s5] sm:$0x3]
      %v212 = vld [vmem:[#allocation2] sm:$0x3]
      %214 = vset.pattern.permute.xlu0 0
      %215 = vperm.xlu0 %214, %v211
      %v216 = vpop.permute.xlu0 %215
      %v218 = vmul.f32 %v212, %v216
      %v219 = vld [vmem:[#allocation3] sm:$0x3]
      %220 = vset.pattern.permute.xlu0 1
      %221 = vperm.xlu0 %220, %v211
      %v222 = vpop.permute.xlu0 %221
      %v224 = vmul.f32 %v219, %v222
      %v225 = vld [vmem:[%s4] sm:$0x3]
      %v226 = vld [vmem:[%s7] sm:$0xff]
      %v227 = vld [vmem:[%s8] sm:$0xf]
      %vm228 = vcmask 31744
      %v230 = vsel %vm228, %v218, 0
      %vm232 = vcmask 1043456
      %v234 = vsel %vm232, %v227, 0
      %236 = vmatpush.msra.mxu0 0.0
      %237 = vmatpush.msra.mxu0 0.0
      %238 = vmatpush.msra.mxu0 0.0
      %239 = vmatpush.msra.mxu0 0.0
      %240 = vmatpush.msra.mxu0 0.0
      %241 = vmatpush.msra.mxu0 0.0
      %242 = vmatpush.msra.mxu0 0.0
      %243 = vmatpush.msra.mxu0 0.0
      %244 = vmatpush.msra.mxu0 0.0
      %245 = vmatpush.msra.mxu0 0.0
      %246 = vmatpush.msra.mxu0 0.0
      %247 = vmatpush.msra.mxu0 0.0
      %248 = vmatpush.msra.mxu0 0.0
      %249 = vmatpush.msra.mxu0 0.0
      %250 = vmatpush.msra.mxu0 0.0
      %251 = vmatpush.msra.mxu0 %v234
      %252 = vmatmul.f32.gmra.mxu0 %v230
      %v253 = vpop.f32.mrf.mxu0
      %v254 = vadd.f32 0.0, %v253
      %255 = vdwg.mxu0
      %vm256 = vcmask 64512
      %v258 = vsel %vm256, %v225, 0
      %260 = vmatpush.msra.mxu0 0.0
      %261 = vmatpush.msra.mxu0 0.0
      %262 = vmatpush.msra.mxu0 0.0
      %263 = vmatpush.msra.mxu0 0.0
      %264 = vmatpush.msra.mxu0 0.0
      %265 = vmatpush.msra.mxu0 0.0
      %266 = vmatpush.msra.mxu0 0.0
      %267 = vmatpush.msra.mxu0 0.0
      %268 = vmatpush.msra.mxu0 0.0
      %269 = vmatpush.msra.mxu0 0.0
      %270 = vmatpush.msra.mxu0 0.0
      %271 = vmatpush.msra.mxu0 0.0
      %272 = vmatpush.msra.mxu0 0.0
      %273 = vmatpush.msra.mxu0 0.0
      %274 = vmatpush.msra.mxu0 0.0
      %275 = vmatpush.msra.mxu0 %v226
      %276 = vmatmul.f32.gmra.mxu0 %v258
      %v277 = vpop.f32.mrf.mxu0
      %v278 = vadd.f32 %v254, %v277
      %279 = vdwg.mxu0
      %v280 = vld [vmem:[%s9] sm:$0x3f]
      %vm281 = vcmask 48128
      %v283 = vsel %vm281, %v224, 0
      %vm285 = vcmask 1045504
      %v287 = vsel %vm285, %v280, 0
      %289 = vmatpush.msra.mxu0 0.0
      %290 = vmatpush.msra.mxu0 0.0
      %291 = vmatpush.msra.mxu0 0.0
      %292 = vmatpush.msra.mxu0 0.0
      %293 = vmatpush.msra.mxu0 0.0
      %294 = vmatpush.msra.mxu0 0.0
      %295 = vmatpush.msra.mxu0 0.0
      %296 = vmatpush.msra.mxu0 0.0
      %297 = vmatpush.msra.mxu0 0.0
      %298 = vmatpush.msra.mxu0 0.0
      %299 = vmatpush.msra.mxu0 0.0
      %300 = vmatpush.msra.mxu0 0.0
      %301 = vmatpush.msra.mxu0 0.0
      %302 = vmatpush.msra.mxu0 0.0
      %303 = vmatpush.msra.mxu0 0.0
      %304 = vmatpush.msra.mxu0 %v287
      %305 = vmatmul.f32.gmra.mxu0 %v283
      %v306 = vpop.f32.mrf.mxu0
      %v307 = vadd.f32 0.0, %v306
      %308 = vdwg.mxu0
      %v309 = vadd.f32 %v278, %v307
      %v310 = vld [vmem:[%s10] sm:$0x1]
      %v312 = vperm.slane %v310, 0
      %v314 = vadd.f32 %v309, %v312
      %vm315 = vcmask 1041408
      %v316 = vsel %vm315, %v314, 0.0
      %317 = vadd.xlane.f32.xlu0 %v316
      %v318 = vpop.xlane.xlu0 %317
      %v319 = vmul.f32 %v318, 0.03125
      %v320 = vlaneseq
      %v321 = vand.u32 %v320, 127
      %vm322 = vcmp.lt.s32.totalorder %v321, 32
      %v323 = vsub.f32 %v314, %v319
      %v324 = vsel %vm322, %v323, 0.0
      %v325 = vmul.f32 %v324, %v324
      %v326 = vsel %vm315, %v325, 0.0
      %327 = vadd.xlane.f32.xlu0 %v326
      %v328 = vpop.xlane.xlu0 %327
      %v329 = vmul.f32 %v328, 0.03125
      %v330 = vadd.f32 %v329, 1e-05
      %v331 = vrsqrt.pop %v330
      %v332 = vmul.f32 %v331, %v330
      %v333 = vmul.f32 %v332, %v331
      %v334 = vmul.f32 0.5, %v333
      %v335 = vsub.f32 1.5, %v334
      %v336 = vmul.f32 %v331, %v335
      %vm337 = vweird.f32 %v330
      %vm338 = vweird.f32 %v331
      %vm339 = vmor %vm337, %vm338
      %v340 = vsel %vm339, %v331, %v336
      %v341 = vmul.f32 %v324, %v340
      %v342 = vld [vmem:[%s11] sm:$0x1]
      %v344 = vperm.slane %v342, 0
      %v346 = vmul.f32 %v341, %v344
      %v347 = vld [vmem:[%s12] sm:$0x1]
      %v349 = vperm.slane %v347, 0
      %v351 = vadd.f32 %v346, %v349
      %v352 = vmax.f32 %v351, 0.0
      %v353 = vld [vmem:[#allocation4] sm:$0x3]
      %v354 = vld [vmem:[#allocation7] sm:$0xff]
      %v355 = vld [vmem:[#allocation7 + $0x8] sm:$0xff]
      %v356 = vld [vmem:[#allocation7 + $0x10] sm:$0xff]
      %v357 = vld [vmem:[#allocation7 + $0x18] sm:$0xff]
      %v358 = vld [vmem:[#allocation7 + $0x20] sm:$0xff]
      %v359 = vld [vmem:[#allocation7 + $0x28] sm:$0xff]
      %v360 = vld [vmem:[#allocation7 + $0x30] sm:$0xff]
      %v361 = vld [vmem:[#allocation7 + $0x38] sm:$0xff]
      %v362 = vld [vmem:[#allocation7 + $0x40] sm:$0xff]
      %v363 = vld [vmem:[#allocation7 + $0x48] sm:$0xff]
      %v364 = vld [vmem:[#allocation7 + $0x50] sm:$0xff]
      %v365 = vld [vmem:[#allocation7 + $0x58] sm:$0xff]
      %v366 = vld [vmem:[#allocation7 + $0x60] sm:$0xff]
      %v367 = vld [vmem:[#allocation7 + $0x68] sm:$0xff]
      %v368 = vld [vmem:[#allocation7 + $0x70] sm:$0xff]
      %v369 = vld [vmem:[#allocation7 + $0x78] sm:$0xff]
      %v370 = vld [vmem:[#allocation7 + $0x80] sm:$0xff]
      %v371 = vld [vmem:[#allocation7 + $0x88] sm:$0xff]
      %v372 = vld [vmem:[#allocation7 + $0x90] sm:$0xff]
      %v373 = vld [vmem:[#allocation7 + $0x98] sm:$0xff]
      %v374 = vld [vmem:[#allocation7 + $0xa0] sm:$0xff]
      %v375 = vld [vmem:[#allocation7 + $0xa8] sm:$0xff]
      %v376 = vld [vmem:[#allocation7 + $0xb0] sm:$0xff]
      %v377 = vld [vmem:[#allocation7 + $0xb8] sm:$0xff]
      %v378 = vld [vmem:[#allocation7 + $0xc0] sm:$0xff]
      %v379 = vld [vmem:[#allocation7 + $0xc8] sm:$0xff]
      %v380 = vld [vmem:[#allocation7 + $0xd0] sm:$0xff]
      %v381 = vld [vmem:[#allocation7 + $0xd8] sm:$0xff]
      %v382 = vld [vmem:[#allocation7 + $0xe0] sm:$0xff]
      %v383 = vld [vmem:[#allocation7 + $0xe8] sm:$0xff]
      %v384 = vld [vmem:[#allocation7 + $0xf0] sm:$0xff]
      %v385 = vld [vmem:[#allocation7 + $0xf8] sm:$0xff]
      %v386 = vld [vmem:[#allocation7 + $0x100] sm:$0xff]
      %v387 = vld [vmem:[#allocation7 + $0x108] sm:$0xff]
      %v388 = vld [vmem:[#allocation7 + $0x110] sm:$0xff]
      %v389 = vld [vmem:[#allocation7 + $0x118] sm:$0xff]
      %v390 = vld [vmem:[#allocation7 + $0x120] sm:$0xff]
      %v391 = vld [vmem:[#allocation7 + $0x128] sm:$0xff]
      %v392 = vld [vmem:[#allocation7 + $0x130] sm:$0xff]
      %v393 = vld [vmem:[#allocation7 + $0x138] sm:$0xff]
      %v394 = vld [vmem:[#allocation7 + $0x140] sm:$0xff]
      %v395 = vld [vmem:[#allocation7 + $0x148] sm:$0xff]
      %v396 = vld [vmem:[#allocation7 + $0x150] sm:$0xff]
      %v397 = vld [vmem:[#allocation7 + $0x158] sm:$0xff]
      %v398 = vld [vmem:[#allocation7 + $0x160] sm:$0xff]
      %v399 = vld [vmem:[#allocation7 + $0x168] sm:$0xff]
      %v400 = vld [vmem:[#allocation7 + $0x170] sm:$0xff]
      %v401 = vld [vmem:[#allocation7 + $0x178] sm:$0xff]
      %v402 = vld [vmem:[%s14] sm:$0x7]
      %v404 = vperm.slane %v402, 0
      %v405 = vperm.slane %v402, 1
      %v406 = vperm.slane %v402, 2
      %410 = vmatpush.msra.mxu0 %v399
      %411 = vmatpush.msra.mxu0 %v396
      %412 = vmatpush.msra.mxu0 %v393
      %413 = vmatpush.msra.mxu0 %v390
      %414 = vmatpush.msra.mxu0 %v387
      %415 = vmatpush.msra.mxu0 %v384
      %416 = vmatpush.msra.mxu0 %v381
      %417 = vmatpush.msra.mxu0 %v378
      %418 = vmatpush.msra.mxu0 %v375
      %419 = vmatpush.msra.mxu0 %v372
      %420 = vmatpush.msra.mxu0 %v369
      %421 = vmatpush.msra.mxu0 %v366
      %422 = vmatpush.msra.mxu0 %v363
      %423 = vmatpush.msra.mxu0 %v360
      %424 = vmatpush.msra.mxu0 %v357
      %425 = vmatpush.msra.mxu0 %v354
      %426 = vmatmul.f32.gmra.mxu0 %v352
      %v427 = vpop.f32.mrf.mxu0
      %v428 = vadd.f32 %v404, %v427
      %429 = vdwg.mxu0
      %430 = vmatpush.msra.mxu0 %v400
      %431 = vmatpush.msra.mxu0 %v397
      %432 = vmatpush.msra.mxu0 %v394
      %433 = vmatpush.msra.mxu0 %v391
      %434 = vmatpush.msra.mxu0 %v388
      %435 = vmatpush.msra.mxu0 %v385
      %436 = vmatpush.msra.mxu0 %v382
      %437 = vmatpush.msra.mxu0 %v379
      %438 = vmatpush.msra.mxu0 %v376
      %439 = vmatpush.msra.mxu0 %v373
      %440 = vmatpush.msra.mxu0 %v370
      %441 = vmatpush.msra.mxu0 %v367
      %442 = vmatpush.msra.mxu0 %v364
      %443 = vmatpush.msra.mxu0 %v361
      %444 = vmatpush.msra.mxu0 %v358
      %445 = vmatpush.msra.mxu0 %v355
      %446 = vmatmul.f32.gmra.mxu0 %v352
      %v447 = vpop.f32.mrf.mxu0
      %v448 = vadd.f32 %v405, %v447
      %449 = vdwg.mxu0
      %450 = vmatpush.msra.mxu0 %v401
      %451 = vmatpush.msra.mxu0 %v398
      %452 = vmatpush.msra.mxu0 %v395
      %453 = vmatpush.msra.mxu0 %v392
      %454 = vmatpush.msra.mxu0 %v389
      %455 = vmatpush.msra.mxu0 %v386
      %456 = vmatpush.msra.mxu0 %v383
      %457 = vmatpush.msra.mxu0 %v380
      %458 = vmatpush.msra.mxu0 %v377
      %459 = vmatpush.msra.mxu0 %v374
      %460 = vmatpush.msra.mxu0 %v371
      %461 = vmatpush.msra.mxu0 %v368
      %462 = vmatpush.msra.mxu0 %v365
      %463 = vmatpush.msra.mxu0 %v362
      %464 = vmatpush.msra.mxu0 %v359
      %465 = vmatpush.msra.mxu0 %v356
      %466 = vmatmul.f32.gmra.mxu0 %v352
      %v467 = vpop.f32.mrf.mxu0
      %v468 = vadd.f32 %v406, %v467
      %469 = vdwg.mxu0
      %v470 = vld [vmem:[#allocation9] sm:$0xff]
      %v471 = vld [vmem:[#allocation9 + $0x8] sm:$0xff]
      %v472 = vld [vmem:[#allocation9 + $0x10] sm:$0xff]
      %v473 = vld [vmem:[#allocation9 + $0x18] sm:$0xff]
      %v474 = vld [vmem:[#allocation9 + $0x20] sm:$0xff]
      %v475 = vld [vmem:[#allocation9 + $0x28] sm:$0xff]
      %v476 = vld [vmem:[#allocation9 + $0x30] sm:$0xff]
      %v477 = vld [vmem:[#allocation9 + $0x38] sm:$0xff]
      %v478 = vld [vmem:[#allocation9 + $0x40] sm:$0xff]
      %v479 = vld [vmem:[#allocation9 + $0x48] sm:$0xff]
      %v480 = vld [vmem:[#allocation9 + $0x50] sm:$0xff]
      %v481 = vld [vmem:[#allocation9 + $0x58] sm:$0xff]
      %v482 = vld [vmem:[#allocation9 + $0x60] sm:$0xff]
      %v483 = vld [vmem:[#allocation9 + $0x68] sm:$0xff]
      %v484 = vld [vmem:[#allocation9 + $0x70] sm:$0xff]
      %v485 = vld [vmem:[#allocation9 + $0x78] sm:$0xff]
      %v486 = vld [vmem:[#allocation9 + $0x80] sm:$0xff]
      %v487 = vld [vmem:[#allocation9 + $0x88] sm:$0xff]
      %v488 = vld [vmem:[#allocation9 + $0x90] sm:$0xff]
      %v489 = vld [vmem:[#allocation9 + $0x98] sm:$0xff]
      %v490 = vld [vmem:[#allocation9 + $0xa0] sm:$0xff]
      %v491 = vld [vmem:[#allocation9 + $0xa8] sm:$0xff]
      %v492 = vld [vmem:[#allocation9 + $0xb0] sm:$0xff]
      %v493 = vld [vmem:[#allocation9 + $0xb8] sm:$0xff]
      %v494 = vld [vmem:[#allocation9 + $0xc0] sm:$0xff]
      %v495 = vld [vmem:[#allocation9 + $0xc8] sm:$0xff]
      %v496 = vld [vmem:[#allocation9 + $0xd0] sm:$0xff]
      %v497 = vld [vmem:[#allocation9 + $0xd8] sm:$0xff]
      %v498 = vld [vmem:[#allocation9 + $0xe0] sm:$0xff]
      %v499 = vld [vmem:[#allocation9 + $0xe8] sm:$0xff]
      %v500 = vld [vmem:[#allocation9 + $0xf0] sm:$0xff]
      %v501 = vld [vmem:[#allocation9 + $0xf8] sm:$0xff]
      %v502 = vld [vmem:[#allocation9 + $0x100] sm:$0xff]
      %v503 = vld [vmem:[#allocation9 + $0x108] sm:$0xff]
      %v504 = vld [vmem:[#allocation9 + $0x110] sm:$0xff]
      %v505 = vld [vmem:[#allocation9 + $0x118] sm:$0xff]
      %v506 = vld [vmem:[#allocation9 + $0x120] sm:$0xff]
      %v507 = vld [vmem:[#allocation9 + $0x128] sm:$0xff]
      %v508 = vld [vmem:[#allocation9 + $0x130] sm:$0xff]
      %v509 = vld [vmem:[#allocation9 + $0x138] sm:$0xff]
      %v510 = vld [vmem:[#allocation9 + $0x140] sm:$0xff]
      %v511 = vld [vmem:[#allocation9 + $0x148] sm:$0xff]
      %v512 = vld [vmem:[#allocation9 + $0x150] sm:$0xff]
      %v513 = vld [vmem:[#allocation9 + $0x158] sm:$0xff]
      %v514 = vld [vmem:[#allocation9 + $0x160] sm:$0xff]
      %v515 = vld [vmem:[#allocation9 + $0x168] sm:$0xff]
      %v516 = vld [vmem:[#allocation9 + $0x170] sm:$0xff]
      %v517 = vld [vmem:[#allocation9 + $0x178] sm:$0xff]
      %v518 = vld [vmem:[%s16] sm:$0x7]
      %v520 = vperm.slane %v518, 0
      %v521 = vperm.slane %v518, 1
      %v522 = vperm.slane %v518, 2
      %526 = vmatpush.msra.mxu0 %v515
      %527 = vmatpush.msra.mxu0 %v512
      %528 = vmatpush.msra.mxu0 %v509
      %529 = vmatpush.msra.mxu0 %v506
      %530 = vmatpush.msra.mxu0 %v503
      %531 = vmatpush.msra.mxu0 %v500
      %532 = vmatpush.msra.mxu0 %v497
      %533 = vmatpush.msra.mxu0 %v494
      %534 = vmatpush.msra.mxu0 %v491
      %535 = vmatpush.msra.mxu0 %v488
      %536 = vmatpush.msra.mxu0 %v485
      %537 = vmatpush.msra.mxu0 %v482
      %538 = vmatpush.msra.mxu0 %v479
      %539 = vmatpush.msra.mxu0 %v476
      %540 = vmatpush.msra.mxu0 %v473
      %541 = vmatpush.msra.mxu0 %v470
      %542 = vmatmul.f32.gmra.mxu0 %v353
      %v543 = vpop.f32.mrf.mxu0
      %v544 = vadd.f32 %v520, %v543
      %545 = vdwg.mxu0
      %546 = vmatpush.msra.mxu0 %v516
      %547 = vmatpush.msra.mxu0 %v513
      %548 = vmatpush.msra.mxu0 %v510
      %549 = vmatpush.msra.mxu0 %v507
      %550 = vmatpush.msra.mxu0 %v504
      %551 = vmatpush.msra.mxu0 %v501
      %552 = vmatpush.msra.mxu0 %v498
      %553 = vmatpush.msra.mxu0 %v495
      %554 = vmatpush.msra.mxu0 %v492
      %555 = vmatpush.msra.mxu0 %v489
      %556 = vmatpush.msra.mxu0 %v486
      %557 = vmatpush.msra.mxu0 %v483
      %558 = vmatpush.msra.mxu0 %v480
      %559 = vmatpush.msra.mxu0 %v477
      %560 = vmatpush.msra.mxu0 %v474
      %561 = vmatpush.msra.mxu0 %v471
      %562 = vmatmul.f32.gmra.mxu0 %v353
      %v563 = vpop.f32.mrf.mxu0
      %v564 = vadd.f32 %v521, %v563
      %565 = vdwg.mxu0
      %566 = vmatpush.msra.mxu0 %v517
      %567 = vmatpush.msra.mxu0 %v514
      %568 = vmatpush.msra.mxu0 %v511
      %569 = vmatpush.msra.mxu0 %v508
      %570 = vmatpush.msra.mxu0 %v505
      %571 = vmatpush.msra.mxu0 %v502
      %572 = vmatpush.msra.mxu0 %v499
      %573 = vmatpush.msra.mxu0 %v496
      %574 = vmatpush.msra.mxu0 %v493
      %575 = vmatpush.msra.mxu0 %v490
      %576 = vmatpush.msra.mxu0 %v487
      %577 = vmatpush.msra.mxu0 %v484
      %578 = vmatpush.msra.mxu0 %v481
      %579 = vmatpush.msra.mxu0 %v478
      %580 = vmatpush.msra.mxu0 %v475
      %581 = vmatpush.msra.mxu0 %v472
      %582 = vmatmul.f32.gmra.mxu0 %v353
      %v583 = vpop.f32.mrf.mxu0
      %v584 = vadd.f32 %v522, %v583
      %585 = vdwg.mxu0
      %v586 = vadd.f32 %v428, %v544
      %v587 = vxor.u32 %v586, 2147483648
      %v588 = vmul.f32 %v587, 1.442695
      %v589 = vpow.pop %v588
      %v590 = vadd.f32 %v589, 1.0
      %v591 = vrcp.pop %v590
      %v592 = vmul.f32 %v590, %v591
      %v593 = vsub.f32 1.0, %v592
      %v594 = vmul.f32 %v591, %v593
      %v595 = vadd.f32 %v591, %v594
      %vm596 = vweird.f32 %v590
      %vm597 = vweird.f32 %v591
      %vm598 = vmor %vm596, %vm597
      %v599 = vsel %vm598, %v591, %v595
      %v600 = vand.u32 2147483647, %v590
      %vm601 = vcmp.eq.f32.partialorder %v600, 8.507059e+37
      %v602 = vand.u32 %v590, 2147483648
      %v603 = vor.u32 1.1754944e-38, %v602
      %v604 = vsel %vm601, %v603, %v599
      %v605 = vmul.f32 1.0, %v604
      %v606 = vadd.f32 %v448, %v564
      %v607 = vxor.u32 %v606, 2147483648
      %v608 = vmul.f32 %v607, 1.442695
      %v609 = vpow.pop %v608
      %v610 = vadd.f32 %v609, 1.0
      %v611 = vrcp.pop %v610
      %v612 = vmul.f32 %v610, %v611
      %v613 = vsub.f32 1.0, %v612
      %v614 = vmul.f32 %v611, %v613
      %v615 = vadd.f32 %v611, %v614
      %vm616 = vweird.f32 %v610
      %vm617 = vweird.f32 %v611
      %vm618 = vmor %vm616, %vm617
      %v619 = vsel %vm618, %v611, %v615
      %v620 = vand.u32 2147483647, %v610
      %vm621 = vcmp.eq.f32.partialorder %v620, 8.507059e+37
      %v622 = vand.u32 %v610, 2147483648
      %v623 = vor.u32 1.1754944e-38, %v622
      %v624 = vsel %vm621, %v623, %v619
      %v625 = vmul.f32 1.0, %v624
      %v626 = vmul.f32 %v605, %v584
      %v627 = vadd.f32 %v468, %v626
      %v628 = vtanh.pop %v627
      %v629 = vsub.f32 1.0, %v625
      %v630 = vmul.f32 %v629, %v628
      %v631 = vmul.f32 %v625, %v353
      %v632 = vadd.f32 %v630, %v631
      %633 = vst [vmem:[#allocation13] sm:$0x3] %v632
      %v634 = vld [vmem:[#allocation10] sm:$0xff]
      %v635 = vld [vmem:[#allocation10 + $0x8] sm:$0xff]
      %v636 = vld [vmem:[#allocation10 + $0x10] sm:$0xff]
      %v637 = vld [vmem:[#allocation10 + $0x18] sm:$0xff]
      %v638 = vld [vmem:[#allocation10 + $0x20] sm:$0xff]
      %v639 = vld [vmem:[#allocation10 + $0x28] sm:$0xff]
      %v640 = vld [vmem:[#allocation10 + $0x30] sm:$0xff]
      %v641 = vld [vmem:[#allocation10 + $0x38] sm:$0xff]
      %v642 = vld [vmem:[#allocation10 + $0x40] sm:$0xff]
      %v643 = vld [vmem:[#allocation10 + $0x48] sm:$0xff]
      %v644 = vld [vmem:[#allocation10 + $0x50] sm:$0xff]
      %v645 = vld [vmem:[#allocation10 + $0x58] sm:$0xff]
      %v646 = vld [vmem:[#allocation10 + $0x60] sm:$0xff]
      %v647 = vld [vmem:[#allocation10 + $0x68] sm:$0xff]
      %v648 = vld [vmem:[#allocation10 + $0x70] sm:$0xff]
      %v649 = vld [vmem:[#allocation10 + $0x78] sm:$0xff]
      %v650 = vld [vmem:[%s18] sm:$0x1]
      %v652 = vperm.slane %v650, 0
      %654 = vmatpush.msra.mxu0 %v649
      %655 = vmatpush.msra.mxu0 %v648
      %656 = vmatpush.msra.mxu0 %v647
      %657 = vmatpush.msra.mxu0 %v646
      %658 = vmatpush.msra.mxu0 %v645
      %659 = vmatpush.msra.mxu0 %v644
      %660 = vmatpush.msra.mxu0 %v643
      %661 = vmatpush.msra.mxu0 %v642
      %662 = vmatpush.msra.mxu0 %v641
      %663 = vmatpush.msra.mxu0 %v640
      %664 = vmatpush.msra.mxu0 %v639
      %665 = vmatpush.msra.mxu0 %v638
      %666 = vmatpush.msra.mxu0 %v637
      %667 = vmatpush.msra.mxu0 %v636
      %668 = vmatpush.msra.mxu0 %v635
      %669 = vmatpush.msra.mxu0 %v634
      %670 = vmatmul.f32.gmra.mxu0 %v632
      %v671 = vpop.f32.mrf.mxu0
      %v672 = vadd.f32 %v652, %v671
      %673 = vdwg.mxu0
      %674 = vst [vmem:[#allocation12] sm:$0x3] %v672
    $region101: #{tpu_custom_call.1} parent=1 // pred_fallthru
      _
    // Predicated region
    $region102: #{tpu_custom_call.1} parent=1 // pred_check
      _
    $region103: #{tpu_custom_call.1} parent=1 // pred_check_branch
      %676 = sbr.rel (0) target = $region105
    $region104: #{tpu_custom_call.1} parent=1 // pred_region
      %678 = vsyncadd [#allocation6], 0
      %s680 = sshll.u32 [#allocation12], 4
      %s681 = int_to_ptr.vmem [resolvable:$true] %s680
      %s682 = sshll.u32 %s19, 4
      %s683 = int_to_ptr.hbm [resolvable:$true] %s682
      %685 = dma.vmem_to_hbm [thread:$0]  %s681, 32, %s683, [#allocation6]
    $region105: #{tpu_custom_call.1} parent=1 // pred_fallthru
      _
    // Predicated region
    $region106: #{tpu_custom_call.1} parent=1 // pred_check
      _
    $region107: #{tpu_custom_call.1} parent=1 // pred_check_branch
      %687 = sbr.rel (0) target = $region109
    $region108: #{tpu_custom_call.1} parent=1 // pred_region
      %689 = vsyncadd [#allocation14], 0
      %s691 = sshll.u32 [#allocation13], 4
      %s692 = int_to_ptr.vmem [resolvable:$true] %s691
      %s693 = sshll.u32 %s20, 4
      %s694 = int_to_ptr.hbm [resolvable:$true] %s693
      %696 = dma.vmem_to_hbm [thread:$0]  %s692, 32, %s694, [#allocation14]
    $region109: #{tpu_custom_call.1} parent=1 // pred_fallthru
      _
    // Predicated region
    $region110: #{tpu_custom_call.1} parent=1 // pred_check
      _
    $region111: #{tpu_custom_call.1} parent=1 // pred_check_branch
      %698 = sbr.rel (0) target = $region113
    $region112: #{tpu_custom_call.1} parent=1 // pred_region
      %700 = dma.done [#allocation6], 32
    $region113: #{tpu_custom_call.1} parent=1 // pred_fallthru
      _
    // Predicated region
    $region114: #{tpu_custom_call.1} parent=1 // pred_check
      _
    $region115: #{tpu_custom_call.1} parent=1 // pred_check_branch
      %702 = sbr.rel (0) target = $region117
    $region116: #{tpu_custom_call.1} parent=1 // pred_region
      %704 = dma.done [#allocation14], 32
    $region117: #{tpu_custom_call.1} parent=1 // pred_fallthru
      _
    %705 = vsyncpa [#allocation5], 1
    %706 = vsyncpa [#allocation8], 1
    %707 = vsyncpa [#allocation11], 1
    %708 = vsyncpa [#allocation6], 1
    %709 = vsyncpa [#allocation14], 1

</llo_original>
